<compile_context>
chip_gen: v5e
topology: v5e:2x2
jax: 0.10.0
libtpu: 0.0.40
codegen_flags: <defaults>
</compile_context>

<pallas_src>
import functools

import jax
import jax.numpy as jnp
from jax.experimental import pallas as pl
from jax.experimental.pallas import tpu as pltpu

KSIZE = 3  # kernel_size of every deconv layer


def _deconvseq_kernel(w_ref, x_ref, o_ref, *, n, H, W, strip, ldata, mask_wrap):
    """w_ref: SMEM (n*9,) f32, 180-deg-flipped (correlation) kernels, row-major (di, dj).
       x_ref: VMEM (Hp, L) f32 packed activations (batch along lanes, zero spacers/pad).
       o_ref: VMEM (Hp, L) f32 packed output."""
    Hp, L = x_ref.shape
    one = jnp.float32(1.0)
    zero = jnp.float32(0.0)

    # ---- layer-invariant masks, built in-kernel (no HBM mask input) -----------
    row = jax.lax.broadcasted_iota(jnp.int32, (Hp, L), 0)
    col = jax.lax.broadcasted_iota(jnp.int32, (Hp, L), 1)
    colf = col.astype(jnp.float32)
    # col % strip without integer div; the +0.5 keeps floor() robust to f32 rounding.
    q = jnp.floor((colf + 0.5) * (1.0 / float(strip)))
    rem = colf - q * float(strip)            # exact: small integers in f32
    data_mask = jnp.where((rem < W) & (col < ldata) & (row < H), one, zero)
    if mask_wrap:  # Hp == H: no natural zero pad row -> kill the vertical wrap rows.
        not_top = jnp.where(row > 0, one, zero)        # zeroes row 0
        not_bot = jnp.where(row < Hp - 1, one, zero)   # zeroes row Hp-1

    cur = x_ref[...]        # unscaled activations (zero at spacer / pad positions)
    scale = None            # carried 1/max|y| from the previous layer (folded forward)

    for layer in range(n):  # n is static -> fully unrolled
        base = layer * KSIZE * KSIZE
        # Fold the carried normalization into the 9 scalar tap weights (conv is
        # linear); these 0-d multiplies sit off the critical path of the rolls below.
        if scale is None:
            w = [w_ref[base + k] for k in range(KSIZE * KSIZE)]
        else:
            w = [w_ref[base + k] * scale for k in range(KSIZE * KSIZE)]

        # All three horizontal taps from 2 lane rolls (XLU).
        left = pltpu.roll(cur, shift=1, axis=1)        # left[:, p]  = cur[:, p-1]
        right = pltpu.roll(cur, shift=L - 1, axis=1)   # right[:, p] = cur[:, p+1]

        # Per-row-band weighted sums (balanced adds).
        band = [(w[3 * d + 0] * left + w[3 * d + 1] * cur) + w[3 * d + 2] * right
                for d in range(KSIZE)]

        # Vertical taps: only 2 sublane rolls, applied to the band sums (linearity).
        top = pltpu.roll(band[0], shift=1, axis=0)       # top[i, :] = band0[i-1, :]
        bot = pltpu.roll(band[2], shift=Hp - 1, axis=0)  # bot[i, :] = band2[i+1, :]
        if mask_wrap:
            top = top * not_top
            bot = bot * not_bot
        acc = (top + band[1]) + bot

        # Re-zero spacers / pad rows so (a) the next layer's rolls see zero borders and
        # (b) the global max matches the unpadded reference.
        am = acc * data_mask
        # tanh (EUP) and the cross-lane max reduce (XLU) run on independent units:
        # max|tanh(a)| == tanh(max|a|)  (tanh is odd and monotone).
        cur = jnp.tanh(am)
        m = jnp.max(jnp.abs(am))
        # Exact reciprocal: approx=True (~2^-12 rel err) would blow the 1e-5 tolerance.
        scale = 1.0 / jnp.tanh(m)

    o_ref[...] = cur if scale is None else cur * scale


def init_deconvseq_weights(n, kernel_size=3, mid_val=1.0, side_val=0.01):
    """Deterministic init matching DeconvSeq.init_deconv:
    ConvTranspose2d weight shape (in=1, out=1, k, k), all side_val, center mid_val."""
    mid = (kernel_size - 1) // 2
    w = jnp.full((n, 1, 1, kernel_size, kernel_size), side_val, dtype=jnp.float32)
    w = w.at[:, 0, 0, mid, mid].set(mid_val)
    return w


def _round_up(x, m):
    return (x + m - 1) // m * m


def deconv_seq(x_nchw, weights):
    """x_nchw: (B, 1, H, W). weights: (n, 1, 1, 3, 3) ConvTranspose2d weights.
    Returns (B, 1, H, W) float32, matching DeconvSeq.forward."""
    n = weights.shape[0]
    B, C, H, W = x_nchw.shape
    assert C == 1 and tuple(weights.shape[1:]) == (1, 1, KSIZE, KSIZE)

    # ---- lane-dense packing (layout plumbing only, outside the kernel) ----
    strip = W + 1                         # per-image strip: [W data cols | shared 0 col]
    ldata = B * strip
    L = max(128, _round_up(ldata, 128))   # lane dim multiple of 128 -> unmasked vst
    Hp = _round_up(H, 8)
    mask_wrap = (Hp == H)                 # no natural zero pad row below the data

    x = jnp.transpose(x_nchw[:, 0].astype(jnp.float32), (1, 0, 2))   # (H, B, W)
    x = jnp.pad(x, ((0, Hp - H), (0, 0), (0, 1)))                    # (Hp, B, strip)
    packed = x.reshape(Hp, ldata)
    if L > ldata:
        packed = jnp.pad(packed, ((0, 0), (0, L - ldata)))           # (Hp, L)

    # conv_transpose(stride=1, padding=1, k=3) == same-padded correlation with the
    # 180-degree-flipped kernel.
    w_flat = weights[:, 0, 0, ::-1, ::-1].reshape(n * KSIZE * KSIZE).astype(jnp.float32)

    out_packed = pl.pallas_call(
        functools.partial(_deconvseq_kernel, n=n, H=H, W=W, strip=strip,
                          ldata=ldata, mask_wrap=mask_wrap),
        out_shape=jax.ShapeDtypeStruct((Hp, L), jnp.float32),
        in_specs=[
            pl.BlockSpec(memory_space=pltpu.MemorySpace.SMEM),   # weights (scalars)
            pl.BlockSpec(memory_space=pltpu.MemorySpace.VMEM),   # packed activations
        ],
        out_specs=pl.BlockSpec(memory_space=pltpu.MemorySpace.VMEM),
    )(w_flat, packed)

    out = out_packed[:H, :ldata].reshape(H, B, strip)[:, :, :W]      # (H, B, W)
    return jnp.transpose(out, (1, 0, 2))[:, None, :, :]              # (B, 1, H, W)


def _reference(x_nchw, weights):
    """Pure-JAX reference of DeconvSeq.forward (same math, no Pallas)."""
    n = weights.shape[0]
    x = x_nchw[:, 0].astype(jnp.float32)
    H, W = x.shape[1], x.shape[2]
    for i in range(n):
        w = weights[i, 0, 0, ::-1, ::-1]
        xp = jnp.pad(x, ((0, 0), (1, 1), (1, 1)))
        acc = jnp.zeros_like(x)
        for di in range(KSIZE):
            for dj in range(KSIZE):
                acc = acc + w[di, dj] * xp[:, di:di + H, dj:dj + W]
        y = jnp.tanh(acc)
        x = y / jnp.max(jnp.abs(y))
    return x[:, None, :, :]


if __name__ == "__main__":
    key = jax.random.PRNGKey(0)
    k_x, k_w = jax.random.split(key)

    B, C, H, W = 4, 1, 16, 16
    n_layers = 3

    x = jax.random.normal(k_x, (B, C, H, W), dtype=jnp.float32)
    # Module init + a small perturbation so the kernels are asymmetric (exercises the
    # correlation-vs-convolution orientation); forward semantics hold for any weights.
    weights = init_deconvseq_weights(n_layers, kernel_size=KSIZE,
                                     mid_val=1.0, side_val=0.01)
    weights = weights + 0.05 * jax.random.normal(k_w, weights.shape, dtype=jnp.float32)

    out = jax.block_until_ready(jax.jit(deconv_seq)(x, weights))
    ref = jax.block_until_ready(_reference(x, weights))

    assert out.shape == (B, C, H, W), out.shape
    assert jnp.allclose(out, ref, rtol=1e-5, atol=1e-5), \
        f"max err = {jnp.max(jnp.abs(out - ref))}"

    print("KERNEL_OK")
</pallas_src>

<mosaic_0001>
module attributes {stable_mosaic.version = 11 : i64} {
  func.func @_deconvseq_kernel(%arg0: memref<27xf32, #tpu.memory_space<smem>>, %arg1: memref<16x128xf32, #tpu.memory_space<vmem>>, %arg2: memref<16x128xf32, #tpu.memory_space<vmem>>) attributes {dimension_semantics = [], scalar_prefetch = 0 : i64, scratch_operands = 0 : i64, tpu.core_type = #tpu.core_type<tc>} {
    %0 = tpu.iota {dimensions = array<i32: 0>} : vector<16x128xi32>
    %1 = tpu.iota {dimensions = array<i32: 1>} : vector<16x128xi32>
    %2 = arith.sitofp %1 : vector<16x128xi32> to vector<16x128xf32>
    %cst = arith.constant 5.000000e-01 : f32
    %3 = vector.broadcast %cst : f32 to vector<16x128xf32>
    %4 = arith.addf %2, %3 : vector<16x128xf32>
    %cst_0 = arith.constant 0.0588235296 : f32
    %5 = vector.broadcast %cst_0 : f32 to vector<16x128xf32>
    %6 = arith.mulf %4, %5 : vector<16x128xf32>
    %7 = math.floor %6 : vector<16x128xf32>
    %cst_1 = arith.constant 1.700000e+01 : f32
    %8 = vector.broadcast %cst_1 : f32 to vector<16x128xf32>
    %9 = arith.mulf %7, %8 : vector<16x128xf32>
    %10 = arith.subf %2, %9 : vector<16x128xf32>
    %cst_2 = arith.constant 1.600000e+01 : f32
    %11 = vector.broadcast %cst_2 : f32 to vector<16x128xf32>
    %12 = arith.cmpf olt, %10, %11 : vector<16x128xf32>
    %c68_i32 = arith.constant 68 : i32
    %13 = vector.broadcast %c68_i32 : i32 to vector<16x128xi32>
    %14 = arith.cmpi slt, %1, %13 : vector<16x128xi32>
    %15 = arith.andi %12, %14 : vector<16x128xi1>
    %c16_i32 = arith.constant 16 : i32
    %16 = vector.broadcast %c16_i32 : i32 to vector<16x128xi32>
    %17 = arith.cmpi slt, %0, %16 : vector<16x128xi32>
    %18 = arith.andi %15, %17 : vector<16x128xi1>
    %cst_3 = arith.constant 1.000000e+00 : f32
    %cst_4 = arith.constant 0.000000e+00 : f32
    %19 = vector.broadcast %cst_3 : f32 to vector<16x128xf32>
    %20 = vector.broadcast %cst_4 : f32 to vector<16x128xf32>
    %21 = arith.select %18, %19, %20 : vector<16x128xi1>, vector<16x128xf32>
    %c0_i32 = arith.constant 0 : i32
    %22 = vector.broadcast %c0_i32 : i32 to vector<16x128xi32>
    %23 = arith.cmpi sgt, %0, %22 : vector<16x128xi32>
    %cst_5 = arith.constant 1.000000e+00 : f32
    %cst_6 = arith.constant 0.000000e+00 : f32
    %24 = vector.broadcast %cst_5 : f32 to vector<16x128xf32>
    %25 = vector.broadcast %cst_6 : f32 to vector<16x128xf32>
    %26 = arith.select %23, %24, %25 : vector<16x128xi1>, vector<16x128xf32>
    %c15_i32 = arith.constant 15 : i32
    %27 = vector.broadcast %c15_i32 : i32 to vector<16x128xi32>
    %28 = arith.cmpi slt, %0, %27 : vector<16x128xi32>
    %cst_7 = arith.constant 1.000000e+00 : f32
    %cst_8 = arith.constant 0.000000e+00 : f32
    %29 = vector.broadcast %cst_7 : f32 to vector<16x128xf32>
    %30 = vector.broadcast %cst_8 : f32 to vector<16x128xf32>
    %31 = arith.select %28, %29, %30 : vector<16x128xi1>, vector<16x128xf32>
    %c0 = arith.constant 0 : index
    %c0_9 = arith.constant 0 : index
    %32 = vector.load %arg1[%c0, %c0_9] : memref<16x128xf32, #tpu.memory_space<vmem>>, vector<16x128xf32>
    %c0_10 = arith.constant 0 : index
    %33 = memref.load %arg0[%c0_10] : memref<27xf32, #tpu.memory_space<smem>>
    %c1 = arith.constant 1 : index
    %34 = memref.load %arg0[%c1] : memref<27xf32, #tpu.memory_space<smem>>
    %c2 = arith.constant 2 : index
    %35 = memref.load %arg0[%c2] : memref<27xf32, #tpu.memory_space<smem>>
    %c3 = arith.constant 3 : index
    %36 = memref.load %arg0[%c3] : memref<27xf32, #tpu.memory_space<smem>>
    %c4 = arith.constant 4 : index
    %37 = memref.load %arg0[%c4] : memref<27xf32, #tpu.memory_space<smem>>
    %c5 = arith.constant 5 : index
    %38 = memref.load %arg0[%c5] : memref<27xf32, #tpu.memory_space<smem>>
    %c6 = arith.constant 6 : index
    %39 = memref.load %arg0[%c6] : memref<27xf32, #tpu.memory_space<smem>>
    %c7 = arith.constant 7 : index
    %40 = memref.load %arg0[%c7] : memref<27xf32, #tpu.memory_space<smem>>
    %c8 = arith.constant 8 : index
    %41 = memref.load %arg0[%c8] : memref<27xf32, #tpu.memory_space<smem>>
    %c1_i32 = arith.constant 1 : i32
    %42 = tpu.dynamic_rotate %32 by %c1_i32 dim 1 : vector<16x128xf32>, i32 -> vector<16x128xf32>
    %c127_i32 = arith.constant 127 : i32
    %43 = tpu.dynamic_rotate %32 by %c127_i32 dim 1 : vector<16x128xf32>, i32 -> vector<16x128xf32>
    %44 = vector.broadcast %33 : f32 to vector<16x128xf32>
    %45 = arith.mulf %44, %42 : vector<16x128xf32>
    %46 = vector.broadcast %34 : f32 to vector<16x128xf32>
    %47 = arith.mulf %46, %32 : vector<16x128xf32>
    %48 = arith.addf %45, %47 : vector<16x128xf32>
    %49 = vector.broadcast %35 : f32 to vector<16x128xf32>
    %50 = arith.mulf %49, %43 : vector<16x128xf32>
    %51 = arith.addf %48, %50 : vector<16x128xf32>
    %52 = vector.broadcast %36 : f32 to vector<16x128xf32>
    %53 = arith.mulf %52, %42 : vector<16x128xf32>
    %54 = vector.broadcast %37 : f32 to vector<16x128xf32>
    %55 = arith.mulf %54, %32 : vector<16x128xf32>
    %56 = arith.addf %53, %55 : vector<16x128xf32>
    %57 = vector.broadcast %38 : f32 to vector<16x128xf32>
    %58 = arith.mulf %57, %43 : vector<16x128xf32>
    %59 = arith.addf %56, %58 : vector<16x128xf32>
    %60 = vector.broadcast %39 : f32 to vector<16x128xf32>
    %61 = arith.mulf %60, %42 : vector<16x128xf32>
    %62 = vector.broadcast %40 : f32 to vector<16x128xf32>
    %63 = arith.mulf %62, %32 : vector<16x128xf32>
    %64 = arith.addf %61, %63 : vector<16x128xf32>
    %65 = vector.broadcast %41 : f32 to vector<16x128xf32>
    %66 = arith.mulf %65, %43 : vector<16x128xf32>
    %67 = arith.addf %64, %66 : vector<16x128xf32>
    %c1_i32_11 = arith.constant 1 : i32
    %68 = tpu.dynamic_rotate %51 by %c1_i32_11 dim 0 : vector<16x128xf32>, i32 -> vector<16x128xf32>
    %c15_i32_12 = arith.constant 15 : i32
    %69 = tpu.dynamic_rotate %67 by %c15_i32_12 dim 0 : vector<16x128xf32>, i32 -> vector<16x128xf32>
    %70 = arith.mulf %68, %26 : vector<16x128xf32>
    %71 = arith.mulf %69, %31 : vector<16x128xf32>
    %72 = arith.addf %70, %59 : vector<16x128xf32>
    %73 = arith.addf %72, %71 : vector<16x128xf32>
    %74 = arith.mulf %73, %21 : vector<16x128xf32>
    %75 = math.tanh %74 : vector<16x128xf32>
    %76 = math.absf %74 : vector<16x128xf32>
    %77 = vector.shape_cast %76 : vector<16x128xf32> to vector<1x16x128xf32>
    %cst_13 = arith.constant dense<0xFF800000> : vector<1xf32>
    %78 = vector.multi_reduction <maximumf>, %77, %cst_13 [1, 2] : vector<1x16x128xf32> to vector<1xf32>
    %79 = vector.shape_cast %78 : vector<1xf32> to vector<1x1x1xf32>
    %80 = vector.extract %79[0, 0, 0] : f32 from vector<1x1x1xf32>
    %81 = math.tanh %80 : f32
    %cst_14 = arith.constant 1.000000e+00 : f32
    %82 = arith.divf %cst_14, %81 : f32
    %c9 = arith.constant 9 : index
    %83 = memref.load %arg0[%c9] : memref<27xf32, #tpu.memory_space<smem>>
    %84 = arith.mulf %83, %82 : f32
    %c10 = arith.constant 10 : index
    %85 = memref.load %arg0[%c10] : memref<27xf32, #tpu.memory_space<smem>>
    %86 = arith.mulf %85, %82 : f32
    %c11 = arith.constant 11 : index
    %87 = memref.load %arg0[%c11] : memref<27xf32, #tpu.memory_space<smem>>
    %88 = arith.mulf %87, %82 : f32
    %c12 = arith.constant 12 : index
    %89 = memref.load %arg0[%c12] : memref<27xf32, #tpu.memory_space<smem>>
    %90 = arith.mulf %89, %82 : f32
    %c13 = arith.constant 13 : index
    %91 = memref.load %arg0[%c13] : memref<27xf32, #tpu.memory_space<smem>>
    %92 = arith.mulf %91, %82 : f32
    %c14 = arith.constant 14 : index
    %93 = memref.load %arg0[%c14] : memref<27xf32, #tpu.memory_space<smem>>
    %94 = arith.mulf %93, %82 : f32
    %c15 = arith.constant 15 : index
    %95 = memref.load %arg0[%c15] : memref<27xf32, #tpu.memory_space<smem>>
    %96 = arith.mulf %95, %82 : f32
    %c16 = arith.constant 16 : index
    %97 = memref.load %arg0[%c16] : memref<27xf32, #tpu.memory_space<smem>>
    %98 = arith.mulf %97, %82 : f32
    %c17 = arith.constant 17 : index
    %99 = memref.load %arg0[%c17] : memref<27xf32, #tpu.memory_space<smem>>
    %100 = arith.mulf %99, %82 : f32
    %c1_i32_15 = arith.constant 1 : i32
    %101 = tpu.dynamic_rotate %75 by %c1_i32_15 dim 1 : vector<16x128xf32>, i32 -> vector<16x128xf32>
    %c127_i32_16 = arith.constant 127 : i32
    %102 = tpu.dynamic_rotate %75 by %c127_i32_16 dim 1 : vector<16x128xf32>, i32 -> vector<16x128xf32>
    %103 = vector.broadcast %84 : f32 to vector<16x128xf32>
    %104 = arith.mulf %103, %101 : vector<16x128xf32>
    %105 = vector.broadcast %86 : f32 to vector<16x128xf32>
    %106 = arith.mulf %105, %75 : vector<16x128xf32>
    %107 = arith.addf %104, %106 : vector<16x128xf32>
    %108 = vector.broadcast %88 : f32 to vector<16x128xf32>
    %109 = arith.mulf %108, %102 : vector<16x128xf32>
    %110 = arith.addf %107, %109 : vector<16x128xf32>
    %111 = vector.broadcast %90 : f32 to vector<16x128xf32>
    %112 = arith.mulf %111, %101 : vector<16x128xf32>
    %113 = vector.broadcast %92 : f32 to vector<16x128xf32>
    %114 = arith.mulf %113, %75 : vector<16x128xf32>
    %115 = arith.addf %112, %114 : vector<16x128xf32>
    %116 = vector.broadcast %94 : f32 to vector<16x128xf32>
    %117 = arith.mulf %116, %102 : vector<16x128xf32>
    %118 = arith.addf %115, %117 : vector<16x128xf32>
    %119 = vector.broadcast %96 : f32 to vector<16x128xf32>
    %120 = arith.mulf %119, %101 : vector<16x128xf32>
    %121 = vector.broadcast %98 : f32 to vector<16x128xf32>
    %122 = arith.mulf %121, %75 : vector<16x128xf32>
    %123 = arith.addf %120, %122 : vector<16x128xf32>
    %124 = vector.broadcast %100 : f32 to vector<16x128xf32>
    %125 = arith.mulf %124, %102 : vector<16x128xf32>
    %126 = arith.addf %123, %125 : vector<16x128xf32>
    %c1_i32_17 = arith.constant 1 : i32
    %127 = tpu.dynamic_rotate %110 by %c1_i32_17 dim 0 : vector<16x128xf32>, i32 -> vector<16x128xf32>
    %c15_i32_18 = arith.constant 15 : i32
    %128 = tpu.dynamic_rotate %126 by %c15_i32_18 dim 0 : vector<16x128xf32>, i32 -> vector<16x128xf32>
    %129 = arith.mulf %127, %26 : vector<16x128xf32>
    %130 = arith.mulf %128, %31 : vector<16x128xf32>
    %131 = arith.addf %129, %118 : vector<16x128xf32>
    %132 = arith.addf %131, %130 : vector<16x128xf32>
    %133 = arith.mulf %132, %21 : vector<16x128xf32>
    %134 = math.tanh %133 : vector<16x128xf32>
    %135 = math.absf %133 : vector<16x128xf32>
    %136 = vector.shape_cast %135 : vector<16x128xf32> to vector<1x16x128xf32>
    %cst_19 = arith.constant dense<0xFF800000> : vector<1xf32>
    %137 = vector.multi_reduction <maximumf>, %136, %cst_19 [1, 2] : vector<1x16x128xf32> to vector<1xf32>
    %138 = vector.shape_cast %137 : vector<1xf32> to vector<1x1x1xf32>
    %139 = vector.extract %138[0, 0, 0] : f32 from vector<1x1x1xf32>
    %140 = math.tanh %139 : f32
    %cst_20 = arith.constant 1.000000e+00 : f32
    %141 = arith.divf %cst_20, %140 : f32
    %c18 = arith.constant 18 : index
    %142 = memref.load %arg0[%c18] : memref<27xf32, #tpu.memory_space<smem>>
    %143 = arith.mulf %142, %141 : f32
    %c19 = arith.constant 19 : index
    %144 = memref.load %arg0[%c19] : memref<27xf32, #tpu.memory_space<smem>>
    %145 = arith.mulf %144, %141 : f32
    %c20 = arith.constant 20 : index
    %146 = memref.load %arg0[%c20] : memref<27xf32, #tpu.memory_space<smem>>
    %147 = arith.mulf %146, %141 : f32
    %c21 = arith.constant 21 : index
    %148 = memref.load %arg0[%c21] : memref<27xf32, #tpu.memory_space<smem>>
    %149 = arith.mulf %148, %141 : f32
    %c22 = arith.constant 22 : index
    %150 = memref.load %arg0[%c22] : memref<27xf32, #tpu.memory_space<smem>>
    %151 = arith.mulf %150, %141 : f32
    %c23 = arith.constant 23 : index
    %152 = memref.load %arg0[%c23] : memref<27xf32, #tpu.memory_space<smem>>
    %153 = arith.mulf %152, %141 : f32
    %c24 = arith.constant 24 : index
    %154 = memref.load %arg0[%c24] : memref<27xf32, #tpu.memory_space<smem>>
    %155 = arith.mulf %154, %141 : f32
    %c25 = arith.constant 25 : index
    %156 = memref.load %arg0[%c25] : memref<27xf32, #tpu.memory_space<smem>>
    %157 = arith.mulf %156, %141 : f32
    %c26 = arith.constant 26 : index
    %158 = memref.load %arg0[%c26] : memref<27xf32, #tpu.memory_space<smem>>
    %159 = arith.mulf %158, %141 : f32
    %c1_i32_21 = arith.constant 1 : i32
    %160 = tpu.dynamic_rotate %134 by %c1_i32_21 dim 1 : vector<16x128xf32>, i32 -> vector<16x128xf32>
    %c127_i32_22 = arith.constant 127 : i32
    %161 = tpu.dynamic_rotate %134 by %c127_i32_22 dim 1 : vector<16x128xf32>, i32 -> vector<16x128xf32>
    %162 = vector.broadcast %143 : f32 to vector<16x128xf32>
    %163 = arith.mulf %162, %160 : vector<16x128xf32>
    %164 = vector.broadcast %145 : f32 to vector<16x128xf32>
    %165 = arith.mulf %164, %134 : vector<16x128xf32>
    %166 = arith.addf %163, %165 : vector<16x128xf32>
    %167 = vector.broadcast %147 : f32 to vector<16x128xf32>
    %168 = arith.mulf %167, %161 : vector<16x128xf32>
    %169 = arith.addf %166, %168 : vector<16x128xf32>
    %170 = vector.broadcast %149 : f32 to vector<16x128xf32>
    %171 = arith.mulf %170, %160 : vector<16x128xf32>
    %172 = vector.broadcast %151 : f32 to vector<16x128xf32>
    %173 = arith.mulf %172, %134 : vector<16x128xf32>
    %174 = arith.addf %171, %173 : vector<16x128xf32>
    %175 = vector.broadcast %153 : f32 to vector<16x128xf32>
    %176 = arith.mulf %175, %161 : vector<16x128xf32>
    %177 = arith.addf %174, %176 : vector<16x128xf32>
    %178 = vector.broadcast %155 : f32 to vector<16x128xf32>
    %179 = arith.mulf %178, %160 : vector<16x128xf32>
    %180 = vector.broadcast %157 : f32 to vector<16x128xf32>
    %181 = arith.mulf %180, %134 : vector<16x128xf32>
    %182 = arith.addf %179, %181 : vector<16x128xf32>
    %183 = vector.broadcast %159 : f32 to vector<16x128xf32>
    %184 = arith.mulf %183, %161 : vector<16x128xf32>
    %185 = arith.addf %182, %184 : vector<16x128xf32>
    %c1_i32_23 = arith.constant 1 : i32
    %186 = tpu.dynamic_rotate %169 by %c1_i32_23 dim 0 : vector<16x128xf32>, i32 -> vector<16x128xf32>
    %c15_i32_24 = arith.constant 15 : i32
    %187 = tpu.dynamic_rotate %185 by %c15_i32_24 dim 0 : vector<16x128xf32>, i32 -> vector<16x128xf32>
    %188 = arith.mulf %186, %26 : vector<16x128xf32>
    %189 = arith.mulf %187, %31 : vector<16x128xf32>
    %190 = arith.addf %188, %177 : vector<16x128xf32>
    %191 = arith.addf %190, %189 : vector<16x128xf32>
    %192 = arith.mulf %191, %21 : vector<16x128xf32>
    %193 = math.tanh %192 : vector<16x128xf32>
    %194 = math.absf %192 : vector<16x128xf32>
    %195 = vector.shape_cast %194 : vector<16x128xf32> to vector<1x16x128xf32>
    %cst_25 = arith.constant dense<0xFF800000> : vector<1xf32>
    %196 = vector.multi_reduction <maximumf>, %195, %cst_25 [1, 2] : vector<1x16x128xf32> to vector<1xf32>
    %197 = vector.shape_cast %196 : vector<1xf32> to vector<1x1x1xf32>
    %198 = vector.extract %197[0, 0, 0] : f32 from vector<1x1x1xf32>
    %199 = math.tanh %198 : f32
    %cst_26 = arith.constant 1.000000e+00 : f32
    %200 = arith.divf %cst_26, %199 : f32
    %201 = vector.broadcast %200 : f32 to vector<16x128xf32>
    %202 = arith.mulf %193, %201 : vector<16x128xf32>
    %c0_27 = arith.constant 0 : index
    %c0_28 = arith.constant 0 : index
    %203 = vector.load %arg2[%c0_27, %c0_28] : memref<16x128xf32, #tpu.memory_space<vmem>>, vector<16x128xf32>
    tpu.vector_store %arg2[%c0_27, %c0_28], %202 {strides = array<i32>} : memref<16x128xf32, #tpu.memory_space<vmem>>, vector<16x128xf32>,
    return
  }
}

</mosaic_0001>

<llo_original>
// kernel: squeeze.3
$region0: #{squeeze.3}
  %s0 = inlined_call_operand.vmem [shape: f32[3,3,3], index: 0, kind: input, shape index: {}]
  %s1 = inlined_call_operand.vmem [shape: f32[27], index: 1, kind: output, shape index: {}]
  $region1: #{squeeze.3} parent=0
    #allocation0 [shape = 'u8[4096]{0}', space=vmem, size = 0x1000, scoped, tag = 'scoped mem for output reshape']
    #allocation1 [shape = 'u8[12288]{0}', space=vmem, size = 0x3000, scoped, tag = 'scoped mem for input reshape']
    %s3 = ssub.s32 16, 1
    %s4 = scalar_lea.vmem %s0, 8
    %v5 = vld [vmem:[%s4] sm:%s3]
    %s6 = scalar_lea.vmem [#allocation1], 16
    %7 = vst [vmem:[%s6] sm:%s3] %v5
    %s8 = scalar_lea.vmem %s0, 4
    %v9 = vld [vmem:[%s8] sm:%s3]
    %s10 = scalar_lea.vmem [#allocation1], 8
    %11 = vst [vmem:[%s10] sm:%s3] %v9
    %v12 = vld [vmem:[%s0] sm:%s3]
    %13 = vst [vmem:[#allocation1] sm:%s3] %v12
    %v14 = vld [vmem:[#allocation1] sm:$0x1]
    %vm15 = vcmask 23552
    %16 = vst.msk [vmem:[#allocation0] sm:$0x1] %vm15, %v14
    %s17 = scalar_lea.vmem [#allocation1], 18
    %v18 = vld [vmem:[%s17] sm:$0x1]
    %19 = vrot.lane.b32.xlu0 %v18, 24
    %v20 = vpop.permute.xlu0 %19
    %vm21 = vcmask 220352
    %22 = vst.msk [vmem:[#allocation0] sm:$0x1] %vm21, %v20
    %s23 = scalar_lea.vmem [#allocation1], 17
    %v24 = vld [vmem:[%s23] sm:$0x1]
    %25 = vrot.lane.b32.xlu0 %v24, 21
    %v26 = vpop.permute.xlu0 %25
    %vm27 = vcmask 195752
    %28 = vst.msk [vmem:[#allocation0] sm:$0x1] %vm27, %v26
    %s29 = scalar_lea.vmem [#allocation1], 16
    %v30 = vld [vmem:[%s29] sm:$0x1]
    %31 = vrot.lane.b32.xlu0 %v30, 18
    %v32 = vpop.permute.xlu0 %31
    %vm33 = vcmask 171152
    %34 = vst.msk [vmem:[#allocation0] sm:$0x1] %vm33, %v32
    %s35 = scalar_lea.vmem [#allocation1], 10
    %v36 = vld [vmem:[%s35] sm:$0x1]
    %37 = vrot.lane.b32.xlu0 %v36, 15
    %v38 = vpop.permute.xlu0 %37
    %vm39 = vcmask 146552
    %40 = vst.msk [vmem:[#allocation0] sm:$0x1] %vm39, %v38
    %s41 = scalar_lea.vmem [#allocation1], 9
    %v42 = vld [vmem:[%s41] sm:$0x1]
    %43 = vrot.lane.b32.xlu0 %v42, 12
    %v44 = vpop.permute.xlu0 %43
    %vm45 = vcmask 121952
    %46 = vst.msk [vmem:[#allocation0] sm:$0x1] %vm45, %v44
    %s47 = scalar_lea.vmem [#allocation1], 8
    %v48 = vld [vmem:[%s47] sm:$0x1]
    %49 = vrot.lane.b32.xlu0 %v48, 9
    %v50 = vpop.permute.xlu0 %49
    %vm51 = vcmask 97352
    %52 = vst.msk [vmem:[#allocation0] sm:$0x1] %vm51, %v50
    %s53 = scalar_lea.vmem [#allocation1], 2
    %v54 = vld [vmem:[%s53] sm:$0x1]
    %55 = vrot.lane.b32.xlu0 %v54, 6
    %v56 = vpop.permute.xlu0 %55
    %vm57 = vcmask 72752
    %58 = vst.msk [vmem:[#allocation0] sm:$0x1] %vm57, %v56
    %s59 = scalar_lea.vmem [#allocation1], 1
    %v60 = vld [vmem:[%s59] sm:$0x1]
    %61 = vrot.lane.b32.xlu0 %v60, 3
    %v62 = vpop.permute.xlu0 %61
    %vm63 = vcmask 48152
    %64 = vst.msk [vmem:[#allocation0] sm:$0x1] %vm63, %v62
    %s66 = ssub.s32 2, 1
    %v67 = vld [vmem:[#allocation0] sm:%s66]
    %s69 = ssub.s32 2, 1
    %70 = vst [vmem:[%s1] sm:%s69] %v67

// kernel: deconv_seq.1
$region0: #{deconv_seq.1}
  #allocation0 [shape = 'u32[]', space=smem, size = 0x4, offset = 0x4, fixed_abs, tag = 'smem constant byte address 0x4 - core index']
  #allocation1 [shape = 'u32[72,128]{1,0:T(1,128)}', space=vmem, size = 0x9000, scoped, tag = 'internal scratch']
  %s0 = inlined_call_operand.vmem [shape: f32[27], index: 0, kind: input, shape index: {}]
  %s1 = inlined_call_operand.vmem [shape: f32[16,128], index: 1, kind: input, shape index: {}]
  %s2 = inlined_call_operand.vmem [shape: f32[16,128], index: 2, kind: output, shape index: {}]
  %s3 = sld [smem:[#allocation0]]
  $region22: #{deconv_seq.1} parent=0
    _
  %s5 = ssub.s32 1, %s3
  %s6 = scalar_select 0, %s5, %s3
  $region1: #{deconv_seq.1} parent=0
    #allocation2 [shape = 'u8[512]{0}', space=smem, size = 0x200, scoped, tag = 'input window, operand 0, single buffered']
    #allocation3 [shape = 's32[1]{0}', space=sflag, size = 0x4, scoped, tag = 'scoped memory for deconv_seq.1']
    %7 = vsyncpa [#allocation3], 0
    // Predicated region
    $region2: #{deconv_seq.1} parent=1 // pred_check
      _
    $region3: #{deconv_seq.1} parent=1 // pred_check_branch
      %9 = sbr.rel (0) target = $region5
    $region4: #{deconv_seq.1} parent=1 // pred_region
      %11 = vsyncadd [#allocation3], 0
      %s13 = sshll.u32 %s0, 4
      %s14 = int_to_ptr.vmem [resolvable:$true] %s13
      %16 = dma.vmem_to_smem %s14, 16, [#allocation2], [#allocation3]
    $region5: #{deconv_seq.1} parent=1 // pred_fallthru
      _
    // Predicated region
    $region6: #{deconv_seq.1} parent=1 // pred_check
      _
    $region7: #{deconv_seq.1} parent=1 // pred_check_branch
      %18 = sbr.rel (0) target = $region9
    $region8: #{deconv_seq.1} parent=1 // pred_region
      _
    $region9: #{deconv_seq.1} parent=1 // pred_fallthru
      _
    // Predicated region
    $region10: #{deconv_seq.1} parent=1 // pred_check
      _
    $region11: #{deconv_seq.1} parent=1 // pred_check_branch
      %20 = sbr.rel (0) target = $region13
    $region12: #{deconv_seq.1} parent=1 // pred_region
      %22 = dma.done [#allocation3], 16
    $region13: #{deconv_seq.1} parent=1 // pred_fallthru
      _
    %23 = sfence
    %v24 = vlaneseq
    %v25 = vshrl.u32 %v24, 7
    %v26 = vadd.s32 %v25, 8
    %v27 = vlaneseq
    %v28 = vand.u32 %v27, 127
    %v29 = vcvt.s32.f32 %v28
    %v30 = vadd.f32 %v29, 0.5
    %v31 = vmul.f32 %v30, 0.05882353
    %v32 = vfloor.f32 %v31
    %v33 = vmul.f32 %v32, 17.0
    %v34 = vsub.f32 %v29, %v33
    %vm35 = vcmp.lt.f32.partialorder %v34, 16.0
    %vm36 = vcmp.lt.s32.totalorder %v28, 68
    %vm37 = vmand %vm35, %vm36
    %vm38 = vcmp.lt.s32.totalorder %v25, 16
    %vm39 = vcmp.lt.s32.totalorder %v26, 16
    %vm40 = vmand %vm37, %vm38
    %vm41 = vmand %vm37, %vm39
    %v42 = vsel %vm40, 1.0, 0.0
    %v43 = vsel %vm41, 1.0, 0.0
    %vm44 = vcmp.gt.s32.totalorder %v25, 0
    %vm45 = vcmp.gt.s32.totalorder %v26, 0
    %v46 = vsel %vm44, 1.0, 0.0
    %v47 = vsel %vm45, 1.0, 0.0
    %vm48 = vcmp.lt.s32.totalorder %v25, 15
    %vm49 = vcmp.lt.s32.totalorder %v26, 15
    %v50 = vsel %vm48, 1.0, 0.0
    %v51 = vsel %vm49, 1.0, 0.0
    %v52 = vld [vmem:[%s1] sm:$0xff]
    %v53 = vld [vmem:[%s1 + $0x8] sm:$0xff]
    %s54 = sld [smem:[#allocation2]]
    %s55 = sld [smem:[#allocation2 + $0x1]]
    %s56 = sld [smem:[#allocation2 + $0x2]]
    %s57 = sld [smem:[#allocation2 + $0x3]]
    %s58 = sld [smem:[#allocation2 + $0x4]]
    %s59 = sld [smem:[#allocation2 + $0x5]]
    %s60 = sld [smem:[#allocation2 + $0x6]]
    %s61 = sld [smem:[#allocation2 + $0x7]]
    %s62 = sld [smem:[#allocation2 + $0x8]]
    %63 = vrot.lane.b32.xlu0 %v52, 1
    %v64 = vpop.permute.xlu0 %63
    %65 = vrot.lane.b32.xlu0 %v53, 1
    %v66 = vpop.permute.xlu0 %65
    %67 = vrot.lane.b32.xlu0 %v52, 127
    %v68 = vpop.permute.xlu0 %67
    %69 = vrot.lane.b32.xlu0 %v53, 127
    %v70 = vpop.permute.xlu0 %69
    %v71 = vstv %s54
    %v72 = vmul.f32 %v71, %v64
    %v73 = vmul.f32 %v71, %v66
    %v74 = vstv %s55
    %v75 = vmul.f32 %v74, %v52
    %v76 = vmul.f32 %v74, %v53
    %v77 = vadd.f32 %v72, %v75
    %v78 = vadd.f32 %v73, %v76
    %v79 = vstv %s56
    %v80 = vmul.f32 %v79, %v68
    %v81 = vmul.f32 %v79, %v70
    %v82 = vadd.f32 %v77, %v80
    %v83 = vadd.f32 %v78, %v81
    %v84 = vstv %s57
    %v85 = vmul.f32 %v84, %v64
    %v86 = vmul.f32 %v84, %v66
    %v87 = vstv %s58
    %v88 = vmul.f32 %v87, %v52
    %v89 = vmul.f32 %v87, %v53
    %v90 = vadd.f32 %v85, %v88
    %v91 = vadd.f32 %v86, %v89
    %v92 = vstv %s59
    %v93 = vmul.f32 %v92, %v68
    %v94 = vmul.f32 %v92, %v70
    %v95 = vadd.f32 %v90, %v93
    %v96 = vadd.f32 %v91, %v94
    %v97 = vstv %s60
    %v98 = vmul.f32 %v97, %v64
    %v99 = vmul.f32 %v97, %v66
    %v100 = vstv %s61
    %v101 = vmul.f32 %v100, %v52
    %v102 = vmul.f32 %v100, %v53
    %v103 = vadd.f32 %v98, %v101
    %v104 = vadd.f32 %v99, %v102
    %v105 = vstv %s62
    %v106 = vmul.f32 %v105, %v68
    %v107 = vmul.f32 %v105, %v70
    %v108 = vadd.f32 %v103, %v106
    %v109 = vadd.f32 %v104, %v107
    %v110 = vrot.slane %v82, 7
    %v111 = vrot.slane %v83, 7
    %vm112 = vcmp.lt.s32.totalorder %v25, 1
    %v113 = vsel %vm112, %v110, %v111
    %v114 = vsel %vm112, %v111, %v110
    %v115 = vrot.slane %v108, 1
    %v116 = vrot.slane %v109, 1
    %vm117 = vcmp.lt.s32.totalorder %v25, 7
    %v118 = vsel %vm117, %v115, %v116
    %v119 = vsel %vm117, %v116, %v115
    %v120 = vmul.f32 %v114, %v46
    %v121 = vmul.f32 %v113, %v47
    %v122 = vmul.f32 %v118, %v50
    %v123 = vmul.f32 %v119, %v51
    %v124 = vadd.f32 %v120, %v95
    %v125 = vadd.f32 %v121, %v96
    %v126 = vadd.f32 %v124, %v122
    %v127 = vadd.f32 %v125, %v123
    %v128 = vmul.f32 %v126, %v42
    %v129 = vmul.f32 %v127, %v43
    %v130 = vtanh.pop %v128
    %v131 = vtanh.pop %v129
    %v132 = vand.u32 2147483647, %v128
    %v133 = vand.u32 2147483647, %v129
    %v134 = vmax.f32 %v132, %v133
    %135 = vmax.xlane.f32.xlu0 %v134
    %v136 = vpop.xlane.xlu0 %135
    %v137 = vrot.slane %v136, 4
    %v138 = vmax.f32 %v136, %v137
    %v139 = vrot.slane %v138, 2
    %v140 = vmax.f32 %v138, %v139
    %v141 = vrot.slane %v140, 1
    %v142 = vmax.f32 %v140, %v141
    %s143 = vtos %v142
    %v144 = vstv %s143
    %v145 = vtanh.pop %v144
    %s146 = vtos %v145
    %v147 = vstv %s146
    %v148 = vrcp.pop %v147
    %v149 = vmul.f32 %v147, %v148
    %v150 = vsub.f32 1.0, %v149
    %v151 = vmul.f32 %v148, %v150
    %v152 = vadd.f32 %v148, %v151
    %vm153 = vweird.f32 %v147
    %vm154 = vweird.f32 %v148
    %vm155 = vmor %vm153, %vm154
    %v156 = vsel %vm155, %v148, %v152
    %v157 = vand.u32 2147483647, %v147
    %vm158 = vcmp.eq.f32.partialorder %v157, 8.507059e+37
    %v159 = vand.u32 %v147, 2147483648
    %v160 = vor.u32 1.1754944e-38, %v159
    %v161 = vsel %vm158, %v160, %v156
    %s162 = vtos %v161
    %s163 = sld [smem:[#allocation2 + $0x9]]
    %s164 = smul.f32 %s163, %s162
    %s165 = sld [smem:[#allocation2 + $0xa]]
    %s166 = smul.f32 %s165, %s162
    %s167 = sld [smem:[#allocation2 + $0xb]]
    %s168 = smul.f32 %s167, %s162
    %s169 = sld [smem:[#allocation2 + $0xc]]
    %s170 = smul.f32 %s169, %s162
    %s171 = sld [smem:[#allocation2 + $0xd]]
    %s172 = smul.f32 %s171, %s162
    %s173 = sld [smem:[#allocation2 + $0xe]]
    %s174 = smul.f32 %s173, %s162
    %s175 = sld [smem:[#allocation2 + $0xf]]
    %s176 = smul.f32 %s175, %s162
    %s177 = sld [smem:[#allocation2 + $0x10]]
    %s178 = smul.f32 %s177, %s162
    %s179 = sld [smem:[#allocation2 + $0x11]]
    %s180 = smul.f32 %s179, %s162
    %181 = vrot.lane.b32.xlu0 %v130, 1
    %v182 = vpop.permute.xlu0 %181
    %183 = vrot.lane.b32.xlu0 %v131, 1
    %v184 = vpop.permute.xlu0 %183
    %185 = vrot.lane.b32.xlu0 %v130, 127
    %v186 = vpop.permute.xlu0 %185
    %187 = vrot.lane.b32.xlu0 %v131, 127
    %v188 = vpop.permute.xlu0 %187
    %v189 = vstv %s164
    %v190 = vmul.f32 %v189, %v182
    %v191 = vmul.f32 %v189, %v184
    %v192 = vstv %s166
    %v193 = vmul.f32 %v192, %v130
    %v194 = vmul.f32 %v192, %v131
    %v195 = vadd.f32 %v190, %v193
    %v196 = vadd.f32 %v191, %v194
    %v197 = vstv %s168
    %v198 = vmul.f32 %v197, %v186
    %v199 = vmul.f32 %v197, %v188
    %v200 = vadd.f32 %v195, %v198
    %v201 = vadd.f32 %v196, %v199
    %v202 = vstv %s170
    %v203 = vmul.f32 %v202, %v182
    %v204 = vmul.f32 %v202, %v184
    %v205 = vstv %s172
    %v206 = vmul.f32 %v205, %v130
    %v207 = vmul.f32 %v205, %v131
    %v208 = vadd.f32 %v203, %v206
    %v209 = vadd.f32 %v204, %v207
    %v210 = vstv %s174
    %v211 = vmul.f32 %v210, %v186
    %v212 = vmul.f32 %v210, %v188
    %v213 = vadd.f32 %v208, %v211
    %v214 = vadd.f32 %v209, %v212
    %v215 = vstv %s176
    %v216 = vmul.f32 %v215, %v182
    %v217 = vmul.f32 %v215, %v184
    %v218 = vstv %s178
    %v219 = vmul.f32 %v218, %v130
    %v220 = vmul.f32 %v218, %v131
    %v221 = vadd.f32 %v216, %v219
    %v222 = vadd.f32 %v217, %v220
    %v223 = vstv %s180
    %v224 = vmul.f32 %v223, %v186
    %v225 = vmul.f32 %v223, %v188
    %v226 = vadd.f32 %v221, %v224
    %v227 = vadd.f32 %v222, %v225
    %v228 = vrot.slane %v200, 7
    %v229 = vrot.slane %v201, 7
    %v230 = vsel %vm112, %v228, %v229
    %v231 = vsel %vm112, %v229, %v228
    %v232 = vrot.slane %v226, 1
    %v233 = vrot.slane %v227, 1
    %v234 = vsel %vm117, %v232, %v233
    %v235 = vsel %vm117, %v233, %v232
    %v236 = vmul.f32 %v231, %v46
    %v237 = vmul.f32 %v230, %v47
    %v238 = vmul.f32 %v234, %v50
    %v239 = vmul.f32 %v235, %v51
    %v240 = vadd.f32 %v236, %v213
    %v241 = vadd.f32 %v237, %v214
    %v242 = vadd.f32 %v240, %v238
    %v243 = vadd.f32 %v241, %v239
    %v244 = vmul.f32 %v242, %v42
    %v245 = vmul.f32 %v243, %v43
    %v246 = vtanh.pop %v244
    %v247 = vtanh.pop %v245
    %v248 = vand.u32 2147483647, %v244
    %v249 = vand.u32 2147483647, %v245
    %v250 = vmax.f32 %v248, %v249
    %251 = vmax.xlane.f32.xlu0 %v250
    %v252 = vpop.xlane.xlu0 %251
    %v253 = vrot.slane %v252, 4
    %v254 = vmax.f32 %v252, %v253
    %v255 = vrot.slane %v254, 2
    %v256 = vmax.f32 %v254, %v255
    %v257 = vrot.slane %v256, 1
    %v258 = vmax.f32 %v256, %v257
    %s259 = vtos %v258
    %v260 = vstv %s259
    %v261 = vtanh.pop %v260
    %s262 = vtos %v261
    %v263 = vstv %s262
    %v264 = vrcp.pop %v263
    %v265 = vmul.f32 %v263, %v264
    %v266 = vsub.f32 1.0, %v265
    %v267 = vmul.f32 %v264, %v266
    %v268 = vadd.f32 %v264, %v267
    %vm269 = vweird.f32 %v263
    %vm270 = vweird.f32 %v264
    %vm271 = vmor %vm269, %vm270
    %v272 = vsel %vm271, %v264, %v268
    %v273 = vand.u32 2147483647, %v263
    %vm274 = vcmp.eq.f32.partialorder %v273, 8.507059e+37
    %v275 = vand.u32 %v263, 2147483648
    %v276 = vor.u32 1.1754944e-38, %v275
    %v277 = vsel %vm274, %v276, %v272
    %s278 = vtos %v277
    %s279 = sld [smem:[#allocation2 + $0x12]]
    %s280 = smul.f32 %s279, %s278
    %s281 = sld [smem:[#allocation2 + $0x13]]
    %s282 = smul.f32 %s281, %s278
    %s283 = sld [smem:[#allocation2 + $0x14]]
    %s284 = smul.f32 %s283, %s278
    %s285 = sld [smem:[#allocation2 + $0x15]]
    %s286 = smul.f32 %s285, %s278
    %s287 = sld [smem:[#allocation2 + $0x16]]
    %s288 = smul.f32 %s287, %s278
    %s289 = sld [smem:[#allocation2 + $0x17]]
    %s290 = smul.f32 %s289, %s278
    %s291 = sld [smem:[#allocation2 + $0x18]]
    %s292 = smul.f32 %s291, %s278
    %s293 = sld [smem:[#allocation2 + $0x19]]
    %s294 = smul.f32 %s293, %s278
    %s295 = sld [smem:[#allocation2 + $0x1a]]
    %s296 = smul.f32 %s295, %s278
    %297 = vrot.lane.b32.xlu0 %v246, 1
    %v298 = vpop.permute.xlu0 %297
    %299 = vrot.lane.b32.xlu0 %v247, 1
    %v300 = vpop.permute.xlu0 %299
    %301 = vrot.lane.b32.xlu0 %v246, 127
    %v302 = vpop.permute.xlu0 %301
    %303 = vrot.lane.b32.xlu0 %v247, 127
    %v304 = vpop.permute.xlu0 %303
    %v305 = vstv %s280
    %v306 = vmul.f32 %v305, %v298
    %v307 = vmul.f32 %v305, %v300
    %v308 = vstv %s282
    %v309 = vmul.f32 %v308, %v246
    %v310 = vmul.f32 %v308, %v247
    %v311 = vadd.f32 %v306, %v309
    %v312 = vadd.f32 %v307, %v310
    %v313 = vstv %s284
    %v314 = vmul.f32 %v313, %v302
    %v315 = vmul.f32 %v313, %v304
    %v316 = vadd.f32 %v311, %v314
    %v317 = vadd.f32 %v312, %v315
    %v318 = vstv %s286
    %v319 = vmul.f32 %v318, %v298
    %v320 = vmul.f32 %v318, %v300
    %v321 = vstv %s288
    %v322 = vmul.f32 %v321, %v246
    %v323 = vmul.f32 %v321, %v247
    %v324 = vadd.f32 %v319, %v322
    %v325 = vadd.f32 %v320, %v323
    %v326 = vstv %s290
    %v327 = vmul.f32 %v326, %v302
    %v328 = vmul.f32 %v326, %v304
    %v329 = vadd.f32 %v324, %v327
    %v330 = vadd.f32 %v325, %v328
    %v331 = vstv %s292
    %v332 = vmul.f32 %v331, %v298
    %v333 = vmul.f32 %v331, %v300
    %v334 = vstv %s294
    %v335 = vmul.f32 %v334, %v246
    %v336 = vmul.f32 %v334, %v247
    %v337 = vadd.f32 %v332, %v335
    %v338 = vadd.f32 %v333, %v336
    %v339 = vstv %s296
    %v340 = vmul.f32 %v339, %v302
    %v341 = vmul.f32 %v339, %v304
    %v342 = vadd.f32 %v337, %v340
    %v343 = vadd.f32 %v338, %v341
    %v344 = vrot.slane %v316, 7
    %v345 = vrot.slane %v317, 7
    %v346 = vsel %vm112, %v344, %v345
    %v347 = vsel %vm112, %v345, %v344
    %v348 = vrot.slane %v342, 1
    %v349 = vrot.slane %v343, 1
    %v350 = vsel %vm117, %v348, %v349
    %v351 = vsel %vm117, %v349, %v348
    %v352 = vmul.f32 %v347, %v46
    %v353 = vmul.f32 %v346, %v47
    %v354 = vmul.f32 %v350, %v50
    %v355 = vmul.f32 %v351, %v51
    %v356 = vadd.f32 %v352, %v329
    %v357 = vadd.f32 %v353, %v330
    %v358 = vadd.f32 %v356, %v354
    %v359 = vadd.f32 %v357, %v355
    %v360 = vmul.f32 %v358, %v42
    %v361 = vmul.f32 %v359, %v43
    %v362 = vtanh.pop %v360
    %v363 = vtanh.pop %v361
    %v364 = vand.u32 2147483647, %v360
    %v365 = vand.u32 2147483647, %v361
    %v366 = vmax.f32 %v364, %v365
    %367 = vmax.xlane.f32.xlu0 %v366
    %v368 = vpop.xlane.xlu0 %367
    %v369 = vrot.slane %v368, 4
    %v370 = vmax.f32 %v368, %v369
    %v371 = vrot.slane %v370, 2
    %v372 = vmax.f32 %v370, %v371
    %v373 = vrot.slane %v372, 1
    %v374 = vmax.f32 %v372, %v373
    %s375 = vtos %v374
    %v376 = vstv %s375
    %v377 = vtanh.pop %v376
    %s378 = vtos %v377
    %v379 = vstv %s378
    %v380 = vrcp.pop %v379
    %v381 = vmul.f32 %v379, %v380
    %v382 = vsub.f32 1.0, %v381
    %v383 = vmul.f32 %v380, %v382
    %v384 = vadd.f32 %v380, %v383
    %vm385 = vweird.f32 %v379
    %vm386 = vweird.f32 %v380
    %vm387 = vmor %vm385, %vm386
    %v388 = vsel %vm387, %v380, %v384
    %v389 = vand.u32 2147483647, %v379
    %vm390 = vcmp.eq.f32.partialorder %v389, 8.507059e+37
    %v391 = vand.u32 %v379, 2147483648
    %v392 = vor.u32 1.1754944e-38, %v391
    %v393 = vsel %vm390, %v392, %v388
    %s394 = vtos %v393
    %v395 = vstv %s394
    %v396 = vmul.f32 %v362, %v395
    %v397 = vmul.f32 %v363, %v395
    %398 = vst [vmem:[%s2] sm:$0xff] %v396
    %399 = vst [vmem:[%s2 + $0x8] sm:$0xff] %v397
    // Predicated region
    $region14: #{deconv_seq.1} parent=1 // pred_check
      _
    $region15: #{deconv_seq.1} parent=1 // pred_check_branch
      %401 = sbr.rel (0) target = $region17
    $region16: #{deconv_seq.1} parent=1 // pred_region
      _
    $region17: #{deconv_seq.1} parent=1 // pred_fallthru
      _
    // Predicated region
    $region18: #{deconv_seq.1} parent=1 // pred_check
      _
    $region19: #{deconv_seq.1} parent=1 // pred_check_branch
      %403 = sbr.rel (0) target = $region21
    $region20: #{deconv_seq.1} parent=1 // pred_region
      _
    $region21: #{deconv_seq.1} parent=1 // pred_fallthru
      _
    %404 = vsyncpa [#allocation3], 1

</llo_original>
